<compile_context>
chip_gen: v5e
topology: v5e:2x2
jax: 0.10.0
libtpu: 0.0.40
codegen_flags: <defaults>
</compile_context>

<pallas_src>
import jax
import jax.numpy as jnp
from jax.experimental import pallas as pl
from jax.experimental.pallas import tpu as pltpu


def _qnet_kernel(x_ref, w1_ref, b1_ref, w2_ref, b2_ref, o_ref):
    # Two MXU matmuls + bias add + ReLU, fused in VMEM.
    x = x_ref[...]
    h = jnp.dot(x, w1_ref[...], preferred_element_type=jnp.float32)
    h = jnp.maximum(h + b1_ref[...], 0.0)                 # b1 is (1, Hp) -> broadcast
    # NOTE: for f32 weights this cast is a no-op. If bf16 weights are ever used
    # the hidden activation is rounded to bf16 before the second MXU pass,
    # which deviates slightly from the f32 PyTorch reference.
    y = jnp.dot(h.astype(w2_ref.dtype), w2_ref[...],
                preferred_element_type=jnp.float32)
    o_ref[...] = (y + b2_ref[...]).astype(o_ref.dtype)    # b2 is (1, C_out)


def prepare_params(w1, b1, w2, b2):
    """One-time (init-time) parameter prep; hoisted out of the forward pass.

    Zero-pads the hidden dim to a multiple of 128 (lane alignment). Exact math:
    padded hidden activations are relu(0 + 0) = 0 and the corresponding zero
    rows of w2 contribute nothing. Biases are reshaped to 2-D so they map
    cleanly onto (sublane, lane) tiles.
    """
    H = w1.shape[1]
    C_out = w2.shape[1]
    Hp = ((H + 127) // 128) * 128
    if Hp != H:
        w1 = jnp.pad(w1, ((0, 0), (0, Hp - H)))
        b1 = jnp.pad(b1, ((0, Hp - H),))
        w2 = jnp.pad(w2, ((0, Hp - H), (0, 0)))
    return w1, b1.reshape(1, Hp), w2, b2.reshape(1, C_out)


def linear_qnet_forward(x, params, *, batch_tile=2048):
    """x: (B, C_in); params = prepare_params(w1, b1, w2, b2) (pre-padded)."""
    w1, b1_2d, w2, b2_2d = params
    B, C_in = x.shape
    Hp = w1.shape[1]
    C_out = w2.shape[1]

    if B <= batch_tile:
        # Small/medium batch: single fused gridless block, no pipeline
        # machinery. Weights (~18 KiB padded f32) + x are trivially
        # VMEM-resident on v5e/v6e/v7x.
        # For best end-to-end latency at tiny B, call this inside the caller's
        # larger jitted step so XLA overlaps it with surrounding work.
        flops = 2 * B * C_in * Hp + 2 * B * Hp * C_out
        bytes_accessed = 4 * (x.size + w1.size + b1_2d.size
                              + w2.size + b2_2d.size + B * C_out)
        return pl.pallas_call(
            _qnet_kernel,
            out_shape=jax.ShapeDtypeStruct((B, C_out), x.dtype),
            in_specs=[pl.BlockSpec(memory_space=pltpu.MemorySpace.VMEM)] * 5,
            out_specs=pl.BlockSpec(memory_space=pltpu.MemorySpace.VMEM),
            cost_estimate=pl.CostEstimate(
                flops=flops, transcendentals=0, bytes_accessed=bytes_accessed),
        )(x, w1, b1_2d, w2, b2_2d)

    # Large batch: tile the batch axis; weights/biases map to block (0, 0)
    # every iteration so they stay VMEM-resident while x / out stream through
    # the pipeline. Ragged last block: Pallas clips the output writeback, so
    # overhang rows of the final x block read unspecified data that is never
    # written back -- no batch padding or output slice needed.
    tm = batch_tile
    # TODO(synk): on v7x, verify whether plain "parallel" actually splits the
    # batch grid across the 2 TensorCores; if not, evaluate CORE_PARALLEL /
    # an explicit core_map. "parallel" vs "arbitrary" is a measured near-no-op.
    return pl.pallas_call(
        _qnet_kernel,
        out_shape=jax.ShapeDtypeStruct((B, C_out), x.dtype),
        grid_spec=pl.GridSpec(
            grid=(pl.cdiv(B, tm),),
            in_specs=[
                pl.BlockSpec((tm, C_in), lambda i: (i, 0)),
                pl.BlockSpec((C_in, Hp), lambda i: (0, 0)),
                pl.BlockSpec((1, Hp), lambda i: (0, 0)),
                pl.BlockSpec((Hp, C_out), lambda i: (0, 0)),
                pl.BlockSpec((1, C_out), lambda i: (0, 0)),
            ],
            out_specs=pl.BlockSpec((tm, C_out), lambda i: (i, 0)),
        ),
        compiler_params=pltpu.CompilerParams(
            dimension_semantics=("parallel",),
            # Explicit scoped-VMEM budget so very large batch tiles compile
            # identically on v5e (16 MiB scoped default) and v6e/v7x (32 MiB).
            vmem_limit_bytes=64 * 1024 * 1024,
        ),
    )(x, w1, b1_2d, w2, b2_2d)


def init_params(key, in_channels, out_channels, hide_channels=100):
    # Deterministic init mimicking nn.Linear default: U(-1/sqrt(fan_in), 1/sqrt(fan_in)).
    k1, k2, k3, k4 = jax.random.split(key, 4)
    bound1 = 1.0 / jnp.sqrt(in_channels)
    bound2 = 1.0 / jnp.sqrt(hide_channels)
    w1 = jax.random.uniform(k1, (in_channels, hide_channels), jnp.float32,
                            -bound1, bound1)
    b1 = jax.random.uniform(k2, (hide_channels,), jnp.float32, -bound1, bound1)
    w2 = jax.random.uniform(k3, (hide_channels, out_channels), jnp.float32,
                            -bound2, bound2)
    b2 = jax.random.uniform(k4, (out_channels,), jnp.float32, -bound2, bound2)
    return w1, b1, w2, b2


def _ref_forward(x, w1, b1, w2, b2):
    return jnp.maximum(x @ w1 + b1, 0.0) @ w2 + b2


if __name__ == "__main__":
    # Small shapes consistent with the module: batch=8, in=32, hidden=100, out=4.
    B, C_IN, HIDE, C_OUT = 8, 32, 100, 4

    key = jax.random.PRNGKey(0)
    kx, kp, kx2 = jax.random.split(key, 3)
    x = jax.random.normal(kx, (B, C_IN), dtype=jnp.float32)
    w1, b1, w2, b2 = init_params(kp, C_IN, C_OUT, HIDE)

    # One-time parameter prep (padding / reshapes hoisted out of forward).
    params = prepare_params(w1, b1, w2, b2)

    # In a real RL loop this pallas_call lives inside the larger jitted
    # act()/train() step; jit here stands in for that.
    fwd = jax.jit(linear_qnet_forward)

    # Small-batch (gridless) path.
    y = jax.block_until_ready(fwd(x, params))
    ref = _ref_forward(x, w1, b1, w2, b2)
    assert y.shape == (B, C_OUT)
    assert jnp.allclose(y, ref, atol=1e-4, rtol=1e-4)

    # Large-batch (batch-tiled, ragged last block: 2500 = 2048 + 452) path.
    B_big = 2500
    x_big = jax.random.normal(kx2, (B_big, C_IN), dtype=jnp.float32)
    y_big = jax.block_until_ready(fwd(x_big, params))
    ref_big = _ref_forward(x_big, w1, b1, w2, b2)
    assert y_big.shape == (B_big, C_OUT)
    assert jnp.allclose(y_big, ref_big, atol=1e-4, rtol=1e-4)

    print("KERNEL_OK")
</pallas_src>

<mosaic_0001>
module attributes {stable_mosaic.version = 11 : i64} {
  func.func @_qnet_kernel(%arg0: memref<8x32xf32, #tpu.memory_space<vmem>>, %arg1: memref<32x128xf32, #tpu.memory_space<vmem>>, %arg2: memref<1x128xf32, #tpu.memory_space<vmem>>, %arg3: memref<128x4xf32, #tpu.memory_space<vmem>>, %arg4: memref<1x4xf32, #tpu.memory_space<vmem>>, %arg5: memref<8x4xf32, #tpu.memory_space<vmem>>) attributes {dimension_semantics = [], scalar_prefetch = 0 : i64, scratch_operands = 0 : i64, tpu.core_type = #tpu.core_type<tc>} {
    %c0 = arith.constant 0 : index
    %c0_0 = arith.constant 0 : index
    %0 = vector.load %arg0[%c0, %c0_0] : memref<8x32xf32, #tpu.memory_space<vmem>>, vector<8x32xf32>
    %c0_1 = arith.constant 0 : index
    %c0_2 = arith.constant 0 : index
    %1 = vector.load %arg1[%c0_1, %c0_2] : memref<32x128xf32, #tpu.memory_space<vmem>>, vector<32x128xf32>
    %cst = arith.constant dense<0.000000e+00> : vector<8x128xf32>
    %2 = tpu.matmul %0, %1, %cst {dimension_numbers = #tpu.dot_dimension_numbers<[1], [0], [0], [1], [0, 0, 1, 1], [], []>} : vector<8x32xf32>, vector<32x128xf32>, vector<8x128xf32> -> vector<8x128xf32>
    %c0_3 = arith.constant 0 : index
    %c0_4 = arith.constant 0 : index
    %3 = vector.load %arg2[%c0_3, %c0_4] : memref<1x128xf32, #tpu.memory_space<vmem>>, vector<1x128xf32>
    %4 = vector.broadcast %3 : vector<1x128xf32> to vector<8x128xf32>
    %5 = arith.addf %2, %4 : vector<8x128xf32>
    %cst_5 = arith.constant 0.000000e+00 : f32
    %6 = vector.broadcast %cst_5 : f32 to vector<8x128xf32>
    %7 = arith.maximumf %5, %6 : vector<8x128xf32>
    %c0_6 = arith.constant 0 : index
    %c0_7 = arith.constant 0 : index
    %8 = vector.load %arg3[%c0_6, %c0_7] : memref<128x4xf32, #tpu.memory_space<vmem>>, vector<128x4xf32>
    %cst_8 = arith.constant dense<0.000000e+00> : vector<8x4xf32>
    %9 = tpu.matmul %7, %8, %cst_8 {dimension_numbers = #tpu.dot_dimension_numbers<[1], [0], [0], [1], [0, 0, 1, 1], [], []>} : vector<8x128xf32>, vector<128x4xf32>, vector<8x4xf32> -> vector<8x4xf32>
    %c0_9 = arith.constant 0 : index
    %c0_10 = arith.constant 0 : index
    %10 = vector.load %arg4[%c0_9, %c0_10] : memref<1x4xf32, #tpu.memory_space<vmem>>, vector<1x4xf32>
    %11 = vector.broadcast %10 : vector<1x4xf32> to vector<8x4xf32>
    %12 = arith.addf %9, %11 : vector<8x4xf32>
    %c0_11 = arith.constant 0 : index
    %c0_12 = arith.constant 0 : index
    %13 = vector.load %arg5[%c0_11, %c0_12] : memref<8x4xf32, #tpu.memory_space<vmem>>, vector<8x4xf32>
    tpu.vector_store %arg5[%c0_11, %c0_12], %12 {strides = array<i32>} : memref<8x4xf32, #tpu.memory_space<vmem>>, vector<8x4xf32>,
    return
  }
}

</mosaic_0001>

<llo_original>
// kernel: linear_qnet_forward.1
$region0: #{linear_qnet_forward.1}
  #allocation0 [shape = 'u32[]', space=smem, size = 0x4, offset = 0x4, fixed_abs, tag = 'smem constant byte address 0x4 - core index']
  #allocation1 [shape = 'u32[72,128]{1,0:T(1,128)}', space=vmem, size = 0x9000, scoped, tag = 'internal scratch']
  %s0 = inlined_call_operand.vmem [shape: f32[8,32], index: 0, kind: input, shape index: {}]
  %s1 = inlined_call_operand.vmem [shape: f32[32,128], index: 1, kind: input, shape index: {}]
  %s2 = inlined_call_operand.vmem [shape: f32[1,128], index: 2, kind: input, shape index: {}]
  %s3 = inlined_call_operand.vmem [shape: f32[128,4], index: 3, kind: input, shape index: {}]
  %s4 = inlined_call_operand.vmem [shape: f32[1,4], index: 4, kind: input, shape index: {}]
  %s5 = inlined_call_operand.vmem [shape: f32[8,4], index: 5, kind: output, shape index: {}]
  %s6 = sld [smem:[#allocation0]]
  $region30: #{linear_qnet_forward.1} parent=0
    _
  %s8 = ssub.s32 1, %s6
  %s9 = scalar_select 0, %s8, %s6
  // Predicated region
  $region2: #{linear_qnet_forward.1} parent=0 // pred_check
    _
  $region3: #{linear_qnet_forward.1} parent=0 // pred_check_branch
    %11 = sbr.rel (0) target = $region5
  $region4: #{linear_qnet_forward.1} parent=0 // pred_region
    _
  $region5: #{linear_qnet_forward.1} parent=0 // pred_fallthru
    _
  // Predicated region
  $region6: #{linear_qnet_forward.1} parent=0 // pred_check
    _
  $region7: #{linear_qnet_forward.1} parent=0 // pred_check_branch
    %13 = sbr.rel (0) target = $region9
  $region8: #{linear_qnet_forward.1} parent=0 // pred_region
    _
  $region9: #{linear_qnet_forward.1} parent=0 // pred_fallthru
    _
  // Predicated region
  $region10: #{linear_qnet_forward.1} parent=0 // pred_check
    _
  $region11: #{linear_qnet_forward.1} parent=0 // pred_check_branch
    %15 = sbr.rel (0) target = $region13
  $region12: #{linear_qnet_forward.1} parent=0 // pred_region
    _
  $region13: #{linear_qnet_forward.1} parent=0 // pred_fallthru
    _
  // Predicated region
  $region14: #{linear_qnet_forward.1} parent=0 // pred_check
    _
  $region15: #{linear_qnet_forward.1} parent=0 // pred_check_branch
    %17 = sbr.rel (0) target = $region17
  $region16: #{linear_qnet_forward.1} parent=0 // pred_region
    _
  $region17: #{linear_qnet_forward.1} parent=0 // pred_fallthru
    _
  // Predicated region
  $region18: #{linear_qnet_forward.1} parent=0 // pred_check
    _
  $region19: #{linear_qnet_forward.1} parent=0 // pred_check_branch
    %19 = sbr.rel (0) target = $region21
  $region20: #{linear_qnet_forward.1} parent=0 // pred_region
    _
  $region21: #{linear_qnet_forward.1} parent=0 // pred_fallthru
    _
  %v20 = vld [vmem:[%s0] sm:$0xff]
  %v21 = vld [vmem:[%s1] sm:$0xff]
  %v22 = vld [vmem:[%s1 + $0x8] sm:$0xff]
  %v23 = vld [vmem:[%s1 + $0x10] sm:$0xff]
  %v24 = vld [vmem:[%s1 + $0x18] sm:$0xff]
  %v25 = vld [vmem:[%s2] sm:$0x1]
  %v27 = vperm.slane %v25, 0
  %vm29 = vcmask 261120
  %v31 = vsel %vm29, %v20, 0
  %33 = vmatpush.msra.mxu0 0.0
  %34 = vmatpush.msra.mxu0 0.0
  %35 = vmatpush.msra.mxu0 0.0
  %36 = vmatpush.msra.mxu0 0.0
  %37 = vmatpush.msra.mxu0 0.0
  %38 = vmatpush.msra.mxu0 0.0
  %39 = vmatpush.msra.mxu0 0.0
  %40 = vmatpush.msra.mxu0 0.0
  %41 = vmatpush.msra.mxu0 0.0
  %42 = vmatpush.msra.mxu0 0.0
  %43 = vmatpush.msra.mxu0 0.0
  %44 = vmatpush.msra.mxu0 0.0
  %45 = vmatpush.msra.mxu0 %v24
  %46 = vmatpush.msra.mxu0 %v23
  %47 = vmatpush.msra.mxu0 %v22
  %48 = vmatpush.msra.mxu0 %v21
  %49 = vmatmul.f32.gmra.mxu0 %v31
  %v50 = vpop.f32.mrf.mxu0
  %v51 = vadd.f32 %v27, %v50
  %52 = vdwg.mxu0
  %v53 = vmax.f32 %v51, 0.0
  %v54 = vld [vmem:[%s3] sm:$0xff]
  %v55 = vld [vmem:[%s3 + $0x8] sm:$0xff]
  %v56 = vld [vmem:[%s3 + $0x10] sm:$0xff]
  %v57 = vld [vmem:[%s3 + $0x18] sm:$0xff]
  %v58 = vld [vmem:[%s3 + $0x20] sm:$0xff]
  %v59 = vld [vmem:[%s3 + $0x28] sm:$0xff]
  %v60 = vld [vmem:[%s3 + $0x30] sm:$0xff]
  %v61 = vld [vmem:[%s3 + $0x38] sm:$0xff]
  %v62 = vld [vmem:[%s3 + $0x40] sm:$0xff]
  %v63 = vld [vmem:[%s3 + $0x48] sm:$0xff]
  %v64 = vld [vmem:[%s3 + $0x50] sm:$0xff]
  %v65 = vld [vmem:[%s3 + $0x58] sm:$0xff]
  %v66 = vld [vmem:[%s3 + $0x60] sm:$0xff]
  %v67 = vld [vmem:[%s3 + $0x68] sm:$0xff]
  %v68 = vld [vmem:[%s3 + $0x70] sm:$0xff]
  %v69 = vld [vmem:[%s3 + $0x78] sm:$0xff]
  %v70 = vld [vmem:[%s4] sm:$0x1]
  %v72 = vperm.slane %v70, 0
  %74 = vmatpush.msra.mxu0 %v69
  %75 = vmatpush.msra.mxu0 %v68
  %76 = vmatpush.msra.mxu0 %v67
  %77 = vmatpush.msra.mxu0 %v66
  %78 = vmatpush.msra.mxu0 %v65
  %79 = vmatpush.msra.mxu0 %v64
  %80 = vmatpush.msra.mxu0 %v63
  %81 = vmatpush.msra.mxu0 %v62
  %82 = vmatpush.msra.mxu0 %v61
  %83 = vmatpush.msra.mxu0 %v60
  %84 = vmatpush.msra.mxu0 %v59
  %85 = vmatpush.msra.mxu0 %v58
  %86 = vmatpush.msra.mxu0 %v57
  %87 = vmatpush.msra.mxu0 %v56
  %88 = vmatpush.msra.mxu0 %v55
  %89 = vmatpush.msra.mxu0 %v54
  %90 = vmatmul.f32.gmra.mxu0 %v53
  %v91 = vpop.f32.mrf.mxu0
  %v92 = vadd.f32 %v72, %v91
  %93 = vdwg.mxu0
  %vm94 = vcmask 31744
  %95 = vst.msk [vmem:[%s5] sm:$0xff] %vm94, %v92
  // Predicated region
  $region22: #{linear_qnet_forward.1} parent=0 // pred_check
    _
  $region23: #{linear_qnet_forward.1} parent=0 // pred_check_branch
    %97 = sbr.rel (0) target = $region25
  $region24: #{linear_qnet_forward.1} parent=0 // pred_region
    _
  $region25: #{linear_qnet_forward.1} parent=0 // pred_fallthru
    _
  // Predicated region
  $region26: #{linear_qnet_forward.1} parent=0 // pred_check
    _
  $region27: #{linear_qnet_forward.1} parent=0 // pred_check_branch
    %99 = sbr.rel (0) target = $region29
  $region28: #{linear_qnet_forward.1} parent=0 // pred_region
    _
  $region29: #{linear_qnet_forward.1} parent=0 // pred_fallthru
    _

</llo_original>
